<compile_context>
chip_gen: v6e
topology: v6e:2x2x1
jax: 0.10.0
libtpu: 0.0.40
codegen_flags: <defaults>
</compile_context>

<pallas_src>
import jax
import jax.numpy as jnp
from jax import lax
from jax.experimental import pallas as pl
from jax.experimental.pallas import tpu as pltpu

CHAR_EMB = 50        # char_embed_size in the reference module
KERNEL_WIDTH = 5     # CNN kernel size used by the assignment's CNN module


def _round_up(x, m):
    return (x + m - 1) // m * m


def _pad_cols(a, ncols):
    return jnp.pad(a, ((0, 0), (0, ncols - a.shape[1])))


def _pad_2d(a, nrows, ncols):
    return jnp.pad(a, ((0, nrows - a.shape[0]), (0, ncols - a.shape[1])))


def _char_cnn_highway_kernel(win_ref, tconv_ref, bconv_ref, whw_ref, bhw_ref, o_ref):
    # win_ref:   (n_out, tile_n, K) int32   win[t, n, k] = char id of word n at position t+k
    # tconv_ref: (K*Vp, Fp) compute dtype   fused emb@conv taps, tap k in rows [k*Vp, k*Vp+V)
    # bconv_ref: (1, Fp) f32
    # whw_ref:   (Fp, 2*Fp) compute dtype   fused [proj | gate] highway weight
    # bhw_ref:   (1, 2*Fp) f32
    # o_ref:     (tile_n, Fp) out dtype
    n_out, tile_n, K = win_ref.shape
    KVp, Fp = tconv_ref.shape
    Vp = KVp // K
    cdt = tconv_ref.dtype
    R = n_out * tile_n

    # 2-D one-hot over (tap, char-id) columns; rows are (t, n)-major so the
    # reshape after the matmul is layout-preserving.  Out-of-range ids (>= V)
    # yield an all-zero row, i.e. a zero embedding (nn.Embedding would raise).
    win = win_ref[...].reshape(R, K)                                   # tiny int32, aligned merge
    iota_v = lax.broadcasted_iota(jnp.int32, (R, Vp), 1)
    oneh = jnp.concatenate(
        [(win[:, k:k + 1] == iota_v).astype(cdt) for k in range(K)],
        axis=1)                                                        # (R, K*Vp), lane-aligned blocks

    # Whole Conv1d as ONE deep matmul (contraction depth K*Vp), f32 accumulation.
    conv = jnp.dot(oneh, tconv_ref[...], preferred_element_type=jnp.float32)   # (R, Fp)
    conv = conv.reshape(n_out, tile_n, Fp)          # splits leading dim on a sublane boundary

    # Max over time, then bias + ReLU hoisted out of the reduction.
    pooled = jnp.maximum(jnp.max(conv, axis=0) + bconv_ref[...], 0.0)  # (tile_n, Fp) f32

    # Fused Highway: single [proj | gate] matmul, split, relu / sigmoid, blend.
    hw = jnp.dot(pooled.astype(cdt), whw_ref[...],
                 preferred_element_type=jnp.float32) + bhw_ref[...]    # (tile_n, 2*Fp)
    proj = jnp.maximum(hw[:, :Fp], 0.0)
    gate = jax.nn.sigmoid(hw[:, Fp:])
    out = pooled + gate * (proj - pooled)
    # TODO(synk): nn.Dropout(p=0.3) is identity in eval mode; train-mode RNG dropout omitted.
    o_ref[...] = out.astype(o_ref.dtype)


def model_embeddings_forward(char_ids, params, *, tile_n=128,
                             compute_dtype=jnp.bfloat16, out_dtype=None):
    """char_ids: int32 (sent_len, batch, max_word_len) -> (sent_len, batch, embed_size)."""
    if out_dtype is None:
        out_dtype = compute_dtype
    emb_tbl = params["char_emb"]                      # (V, C)
    conv_w = params["conv_w"]                         # (F, C, K) torch Conv1d layout
    sent_len, batch, max_word_len = char_ids.shape
    K = conv_w.shape[2]
    assert max_word_len >= K, "max_word_len must be >= CNN kernel width"
    n_words = sent_len * batch
    V, _ = emb_tbl.shape
    F = conv_w.shape[0]
    Fp = _round_up(F, 128)                            # lane-dense output / weights
    Vp = _round_up(V, 128)                            # lane-aligned per-tap one-hot blocks
    n_out = max_word_len - K + 1
    cdt = compute_dtype

    # Keep >= 2 grid steps whenever there is enough work (v7x has 2 TensorCores
    # sharing the "parallel" axis); also keeps per-tile VMEM modest on v5e.
    tile_n = max(8, min(tile_n, _round_up(n_words, 16) // 2))
    tile_n = _round_up(tile_n, 8)
    n_pad = _round_up(n_words, tile_n)

    # Window char-ids, (t, word)-major: win[t, w, k] = ids[w, t + k].
    ids = char_ids.reshape(n_words, max_word_len).astype(jnp.int32)
    if n_pad != n_words:
        ids = jnp.pad(ids, ((0, n_pad - n_words), (0, 0)))   # pad words use id 0; sliced off below
    win = jnp.stack([ids[:, t:t + K] for t in range(n_out)], axis=0)   # (n_out, n_pad, K)

    # Fuse char-embedding into the conv taps: T[k, v, f] = sum_c emb[v, c] * conv_w[f, c, k].
    tconv = jnp.einsum("vc,fck->kvf", emb_tbl, conv_w)                  # (K, V, F) f32
    tconv = jnp.pad(tconv, ((0, 0), (0, Vp - V), (0, Fp - F)))
    tconv = tconv.reshape(K * Vp, Fp).astype(cdt)
    bconv = _pad_cols(params["conv_b"].reshape(1, F), Fp).astype(jnp.float32)

    # Highway: fuse proj|gate into a single (Fp, 2*Fp) weight + (1, 2*Fp) bias.
    wp = _pad_2d(params["proj_w"].T, Fp, Fp)
    wg = _pad_2d(params["gate_w"].T, Fp, Fp)
    whw = jnp.concatenate([wp, wg], axis=1).astype(cdt)
    bp = _pad_cols(params["proj_b"].reshape(1, F), Fp)
    bg = _pad_cols(params["gate_b"].reshape(1, F), Fp)
    bhw = jnp.concatenate([bp, bg], axis=1).astype(jnp.float32)

    itemsize = jnp.dtype(cdt).itemsize
    out_itemsize = jnp.dtype(out_dtype).itemsize
    cost = pl.CostEstimate(
        flops=2 * n_pad * (n_out * K * Vp * Fp + Fp * 2 * Fp),
        transcendentals=n_pad * Fp,
        bytes_accessed=(win.size * 4 + K * Vp * Fp * itemsize + Fp * 2 * Fp * itemsize
                        + 3 * Fp * 4 + n_pad * Fp * out_itemsize),
    )

    out = pl.pallas_call(
        _char_cnn_highway_kernel,
        out_shape=jax.ShapeDtypeStruct((n_pad, Fp), out_dtype),
        grid_spec=pltpu.PrefetchScalarGridSpec(
            num_scalar_prefetch=0,
            grid=(n_pad // tile_n,),
            in_specs=[
                pl.BlockSpec((n_out, tile_n, K), lambda i: (0, i, 0)),   # window char ids
                pl.BlockSpec((K * Vp, Fp), lambda i: (0, 0)),            # fused emb@conv taps
                pl.BlockSpec((1, Fp), lambda i: (0, 0)),                 # conv bias
                pl.BlockSpec((Fp, 2 * Fp), lambda i: (0, 0)),            # highway weight
                pl.BlockSpec((1, 2 * Fp), lambda i: (0, 0)),             # highway bias
            ],
            out_specs=pl.BlockSpec((tile_n, Fp), lambda i: (i, 0)),
        ),
        compiler_params=pltpu.CompilerParams(dimension_semantics=("parallel",)),
        cost_estimate=cost,
    )(win, tconv, bconv, whw, bhw)

    return out[:n_words, :F].reshape(sent_len, batch, F)


def reference_forward(char_ids, params):
    """Pure-JAX reference mirroring the PyTorch forward (eval mode)."""
    emb = params["char_emb"][char_ids]                            # (S, B, L, C)
    S, B, L, C = emb.shape
    x = emb.reshape(S * B, L, C).transpose(0, 2, 1)               # NCW like torch
    conv = lax.conv_general_dilated(
        x, params["conv_w"], window_strides=(1,), padding="VALID",
        dimension_numbers=("NCH", "OIH", "NCH"))
    conv = conv + params["conv_b"][None, :, None]
    pooled = jnp.max(jax.nn.relu(conv), axis=-1)                  # (N, F)
    proj = jax.nn.relu(pooled @ params["proj_w"].T + params["proj_b"])
    gate = jax.nn.sigmoid(pooled @ params["gate_w"].T + params["gate_b"])
    out = gate * proj + (1.0 - gate) * pooled
    return out.reshape(S, B, -1)


def init_params(key, *, vocab_size, embed_size, pad_idx=0):
    ks = jax.random.split(key, 6)
    char_emb = 0.1 * jax.random.normal(ks[0], (vocab_size, CHAR_EMB), jnp.float32)
    char_emb = char_emb.at[pad_idx].set(0.0)                       # padding_idx row
    return {
        "char_emb": char_emb,
        "conv_w": 0.1 * jax.random.normal(ks[1], (embed_size, CHAR_EMB, KERNEL_WIDTH), jnp.float32),
        "conv_b": 0.1 * jax.random.normal(ks[2], (embed_size,), jnp.float32),
        "proj_w": 0.1 * jax.random.normal(ks[3], (embed_size, embed_size), jnp.float32),
        "proj_b": jnp.zeros((embed_size,), jnp.float32),
        "gate_w": 0.1 * jax.random.normal(ks[4], (embed_size, embed_size), jnp.float32),
        "gate_b": 0.1 * jax.random.normal(ks[5], (embed_size,), jnp.float32),
    }


if __name__ == "__main__":
    key = jax.random.PRNGKey(0)
    k_par, k_ids = jax.random.split(key)

    embed_size = 32
    vocab_size = 30
    sent_len, batch, max_word_len = 4, 4, 12

    params = init_params(k_par, vocab_size=vocab_size, embed_size=embed_size)
    char_ids = jax.random.randint(k_ids, (sent_len, batch, max_word_len), 0, vocab_size,
                                  dtype=jnp.int32)

    ref = jax.block_until_ready(reference_forward(char_ids, params))

    # f32 compute path: near-exact check against the JAX reference (multi-tile grid).
    out_f32 = jax.block_until_ready(
        model_embeddings_forward(char_ids, params, compute_dtype=jnp.float32))
    assert out_f32.shape == (sent_len, batch, embed_size)
    assert jnp.allclose(out_f32, ref, rtol=1e-4, atol=1e-5), "f32 mismatch vs JAX reference"

    # bf16 matmul-input / bf16-output path (default perf config): looser tolerance.
    out_bf16 = jax.block_until_ready(model_embeddings_forward(char_ids, params))
    assert out_bf16.shape == (sent_len, batch, embed_size)
    assert jnp.allclose(out_bf16.astype(jnp.float32), ref, rtol=3e-2, atol=3e-2), \
        "bf16 mismatch vs JAX reference"

    print("KERNEL_OK")
</pallas_src>

<mosaic_0001>
module attributes {stable_mosaic.version = 11 : i64} {
  func.func @_char_cnn_highway_kernel(%arg0: i32, %arg1: memref<8x8x5xi32, #tpu.memory_space<vmem>>, %arg2: memref<640x128xf32, #tpu.memory_space<vmem>>, %arg3: memref<1x128xf32, #tpu.memory_space<vmem>>, %arg4: memref<128x256xf32, #tpu.memory_space<vmem>>, %arg5: memref<1x256xf32, #tpu.memory_space<vmem>>, %arg6: memref<8x128xf32, #tpu.memory_space<vmem>>) attributes {dimension_semantics = [#tpu.dimension_semantics<parallel>], iteration_bounds = array<i64: 2>, scalar_prefetch = 0 : i64, scratch_operands = 0 : i64, tpu.core_type = #tpu.core_type<tc>, window_params = [{transform_indices = @transform_0, window_bounds = array<i64: 8, 8, 5>}, {pipeline_mode = #tpu.pipeline_mode<synchronous>, transform_indices = @transform_1, window_bounds = array<i64: 640, 128>}, {pipeline_mode = #tpu.pipeline_mode<synchronous>, transform_indices = @transform_2, window_bounds = array<i64: 1, 128>}, {pipeline_mode = #tpu.pipeline_mode<synchronous>, transform_indices = @transform_3, window_bounds = array<i64: 128, 256>}, {pipeline_mode = #tpu.pipeline_mode<synchronous>, transform_indices = @transform_4, window_bounds = array<i64: 1, 256>}, {transform_indices = @transform_5, window_bounds = array<i64: 8, 128>}]} {
    %c0 = arith.constant 0 : index
    %c0_0 = arith.constant 0 : index
    %c0_1 = arith.constant 0 : index
    %0 = vector.load %arg1[%c0, %c0_0, %c0_1] : memref<8x8x5xi32, #tpu.memory_space<vmem>>, vector<8x8x5xi32>
    %1 = vector.shape_cast %0 : vector<8x8x5xi32> to vector<64x5xi32>
    %2 = tpu.iota {dimensions = array<i32: 1>} : vector<64x128xi32>
    %3 = vector.extract_strided_slice %1 {offsets = [0, 0], sizes = [64, 1], strides = [1, 1]} : vector<64x5xi32> to vector<64x1xi32>
    %4 = vector.broadcast %3 : vector<64x1xi32> to vector<64x128xi32>
    %5 = arith.cmpi eq, %4, %2 : vector<64x128xi32>
    %6 = arith.extui %5 : vector<64x128xi1> to vector<64x128xi32>
    %7 = arith.sitofp %6 : vector<64x128xi32> to vector<64x128xf32>
    %8 = vector.extract_strided_slice %1 {offsets = [0, 1], sizes = [64, 1], strides = [1, 1]} : vector<64x5xi32> to vector<64x1xi32>
    %9 = vector.broadcast %8 : vector<64x1xi32> to vector<64x128xi32>
    %10 = arith.cmpi eq, %9, %2 : vector<64x128xi32>
    %11 = arith.extui %10 : vector<64x128xi1> to vector<64x128xi32>
    %12 = arith.sitofp %11 : vector<64x128xi32> to vector<64x128xf32>
    %13 = vector.extract_strided_slice %1 {offsets = [0, 2], sizes = [64, 1], strides = [1, 1]} : vector<64x5xi32> to vector<64x1xi32>
    %14 = vector.broadcast %13 : vector<64x1xi32> to vector<64x128xi32>
    %15 = arith.cmpi eq, %14, %2 : vector<64x128xi32>
    %16 = arith.extui %15 : vector<64x128xi1> to vector<64x128xi32>
    %17 = arith.sitofp %16 : vector<64x128xi32> to vector<64x128xf32>
    %18 = vector.extract_strided_slice %1 {offsets = [0, 3], sizes = [64, 1], strides = [1, 1]} : vector<64x5xi32> to vector<64x1xi32>
    %19 = vector.broadcast %18 : vector<64x1xi32> to vector<64x128xi32>
    %20 = arith.cmpi eq, %19, %2 : vector<64x128xi32>
    %21 = arith.extui %20 : vector<64x128xi1> to vector<64x128xi32>
    %22 = arith.sitofp %21 : vector<64x128xi32> to vector<64x128xf32>
    %23 = vector.extract_strided_slice %1 {offsets = [0, 4], sizes = [64, 1], strides = [1, 1]} : vector<64x5xi32> to vector<64x1xi32>
    %24 = vector.broadcast %23 : vector<64x1xi32> to vector<64x128xi32>
    %25 = arith.cmpi eq, %24, %2 : vector<64x128xi32>
    %26 = arith.extui %25 : vector<64x128xi1> to vector<64x128xi32>
    %27 = arith.sitofp %26 : vector<64x128xi32> to vector<64x128xf32>
    %28 = tpu.concatenate %7, %12, %17, %22, %27 in 1 : vector<64x128xf32>, vector<64x128xf32>, vector<64x128xf32>, vector<64x128xf32>, vector<64x128xf32> -> vector<64x640xf32>
    %c0_2 = arith.constant 0 : index
    %c0_3 = arith.constant 0 : index
    %29 = vector.load %arg2[%c0_2, %c0_3] : memref<640x128xf32, #tpu.memory_space<vmem>>, vector<640x128xf32>
    %cst = arith.constant dense<0.000000e+00> : vector<64x128xf32>
    %30 = tpu.matmul %28, %29, %cst {dimension_numbers = #tpu.dot_dimension_numbers<[1], [0], [0], [1], [0, 0, 1, 1], [], []>} : vector<64x640xf32>, vector<640x128xf32>, vector<64x128xf32> -> vector<64x128xf32>
    %31 = vector.shape_cast %30 : vector<64x128xf32> to vector<8x8x128xf32>
    %cst_4 = arith.constant dense<0xFF800000> : vector<8x128xf32>
    %32 = vector.multi_reduction <maximumf>, %31, %cst_4 [0] : vector<8x8x128xf32> to vector<8x128xf32>
    %c0_5 = arith.constant 0 : index
    %c0_6 = arith.constant 0 : index
    %33 = vector.load %arg3[%c0_5, %c0_6] : memref<1x128xf32, #tpu.memory_space<vmem>>, vector<1x128xf32>
    %34 = vector.broadcast %33 : vector<1x128xf32> to vector<8x128xf32>
    %35 = arith.addf %32, %34 : vector<8x128xf32>
    %cst_7 = arith.constant 0.000000e+00 : f32
    %36 = vector.broadcast %cst_7 : f32 to vector<8x128xf32>
    %37 = arith.maximumf %35, %36 : vector<8x128xf32>
    %c0_8 = arith.constant 0 : index
    %c0_9 = arith.constant 0 : index
    %38 = vector.load %arg4[%c0_8, %c0_9] : memref<128x256xf32, #tpu.memory_space<vmem>>, vector<128x256xf32>
    %cst_10 = arith.constant dense<0.000000e+00> : vector<8x256xf32>
    %39 = tpu.matmul %37, %38, %cst_10 {dimension_numbers = #tpu.dot_dimension_numbers<[1], [0], [0], [1], [0, 0, 1, 1], [], []>} : vector<8x128xf32>, vector<128x256xf32>, vector<8x256xf32> -> vector<8x256xf32>
    %c0_11 = arith.constant 0 : index
    %c0_12 = arith.constant 0 : index
    %40 = vector.load %arg5[%c0_11, %c0_12] : memref<1x256xf32, #tpu.memory_space<vmem>>, vector<1x256xf32>
    %41 = vector.broadcast %40 : vector<1x256xf32> to vector<8x256xf32>
    %42 = arith.addf %39, %41 : vector<8x256xf32>
    %43 = vector.extract_strided_slice %42 {offsets = [0, 0], sizes = [8, 128], strides = [1, 1]} : vector<8x256xf32> to vector<8x128xf32>
    %cst_13 = arith.constant 0.000000e+00 : f32
    %44 = vector.broadcast %cst_13 : f32 to vector<8x128xf32>
    %45 = arith.maximumf %43, %44 : vector<8x128xf32>
    %46 = vector.extract_strided_slice %42 {offsets = [0, 128], sizes = [8, 128], strides = [1, 1]} : vector<8x256xf32> to vector<8x128xf32>
    %47 = arith.negf %46 : vector<8x128xf32>
    %48 = math.exp %47 : vector<8x128xf32>
    %cst_14 = arith.constant 1.000000e+00 : f32
    %49 = vector.broadcast %cst_14 : f32 to vector<8x128xf32>
    %50 = arith.addf %49, %48 : vector<8x128xf32>
    %51 = arith.divf %49, %50 : vector<8x128xf32>
    %52 = arith.subf %45, %37 : vector<8x128xf32>
    %53 = arith.mulf %51, %52 : vector<8x128xf32>
    %54 = arith.addf %37, %53 : vector<8x128xf32>
    %c0_15 = arith.constant 0 : index
    %c0_16 = arith.constant 0 : index
    %55 = vector.load %arg6[%c0_15, %c0_16] : memref<8x128xf32, #tpu.memory_space<vmem>>, vector<8x128xf32>
    tpu.vector_store %arg6[%c0_15, %c0_16], %54 {strides = array<i32>} : memref<8x128xf32, #tpu.memory_space<vmem>>, vector<8x128xf32>,
    return
  }
  func.func @transform_0(%arg0: i32) -> (i32, i32, i32) {
    %c0_i32 = arith.constant 0 : i32
    %c0_i32_0 = arith.constant 0 : i32
    %c0_i32_1 = arith.constant 0 : i32
    return %c0_i32, %arg0, %c0_i32_0 : i32, i32, i32
  }
  func.func @transform_1(%arg0: i32) -> (i32, i32) {
    %c0_i32 = arith.constant 0 : i32
    %c0_i32_0 = arith.constant 0 : i32
    %c0_i32_1 = arith.constant 0 : i32
    return %c0_i32, %c0_i32_0 : i32, i32
  }
  func.func @transform_2(%arg0: i32) -> (i32, i32) {
    %c0_i32 = arith.constant 0 : i32
    %c0_i32_0 = arith.constant 0 : i32
    %c0_i32_1 = arith.constant 0 : i32
    return %c0_i32, %c0_i32_0 : i32, i32
  }
  func.func @transform_3(%arg0: i32) -> (i32, i32) {
    %c0_i32 = arith.constant 0 : i32
    %c0_i32_0 = arith.constant 0 : i32
    %c0_i32_1 = arith.constant 0 : i32
    return %c0_i32, %c0_i32_0 : i32, i32
  }
  func.func @transform_4(%arg0: i32) -> (i32, i32) {
    %c0_i32 = arith.constant 0 : i32
    %c0_i32_0 = arith.constant 0 : i32
    %c0_i32_1 = arith.constant 0 : i32
    return %c0_i32, %c0_i32_0 : i32, i32
  }
  func.func @transform_5(%arg0: i32) -> (i32, i32) {
    %c0_i32 = arith.constant 0 : i32
    %c0_i32_0 = arith.constant 0 : i32
    return %arg0, %c0_i32 : i32, i32
  }
}

</mosaic_0001>

<llo_original>
// kernel: tpu_custom_call.1
$region0: #{tpu_custom_call.1}
  #allocation0 [shape = 'u32[]', space=smem, size = 0x4, offset = 0x4, fixed_abs, tag = 'smem constant byte address 0x4 - core index']
  #allocation1 [shape = 'u32[144,128]{1,0:T(1,128)}', space=vmem, size = 0x12000, scoped, tag = 'internal scratch']
  %s0 = inlined_call_operand.vmem [shape: s32[8,16,5], index: 0, kind: input, shape index: {}]
  %s1 = inlined_call_operand.hbm [shape: f32[640,128], index: 1, kind: input, shape index: {}]
  %s2 = inlined_call_operand.vmem [shape: f32[1,128], index: 2, kind: input, shape index: {}]
  %s3 = inlined_call_operand.hbm [shape: f32[128,256], index: 3, kind: input, shape index: {}]
  %s4 = inlined_call_operand.vmem [shape: f32[1,256], index: 4, kind: input, shape index: {}]
  %s5 = inlined_call_operand.hbm [shape: f32[16,128], index: 5, kind: output, shape index: {}]
  %s6 = sld [smem:[#allocation0]]
  $region99: #{tpu_custom_call.1} parent=0
    _
  %s8 = ssub.s32 1, %s6
  %s9 = scalar_select 0, %s8, %s6
  $region1: #{tpu_custom_call.1} parent=0
    #allocation2 [shape = 'u8[65536]{0}', space=vmem, size = 0x10000, scoped, tag = 'input window, operand 0']
    #allocation3 [shape = 'u8[327680]{0}', space=vmem, size = 0x50000, scoped, tag = 'input window, operand 1, single buffered']
    #allocation4 [shape = 's32[2]{0}', space=sflag, size = 0x8, scoped, tag = 'scoped memory for tpu_custom_call.1']
    #allocation5 [shape = 's32[2]{0}', space=sflag, size = 0x8, scoped, tag = 'scoped memory for tpu_custom_call.1']
    #allocation6 [shape = 'u8[131072]{0}', space=vmem, size = 0x20000, scoped, tag = 'input window, operand 3, single buffered']
    #allocation7 [shape = 's32[1]{0}', space=sflag, size = 0x4, scoped, tag = 'scoped memory for tpu_custom_call.1']
    #allocation8 [shape = 'u8[8192]{0}', space=vmem, size = 0x2000, scoped, tag = 'output window, operand 0']
    %10 = vsyncpa [#allocation4], 0
    %11 = vsyncpa [#allocation7], 0
    %12 = vsyncpa [#allocation5], 0
    %s13 = scalar_lea.sflag [#allocation5], 1
    %14 = vsyncpa %s13, 0
    loop: start=0, step=1, limit=4
    $region2: #{tpu_custom_call.1} parent=1 // loop_pre_header
      _
    $region3: #{tpu_custom_call.1} parent=1 // loop_header
      %s16 = sphi 0, %s20
      %p17 = scmp.ge.s32.totalorder %s16, 4
      %s26 = sphi 0, %s28
      %s29 = sphi 0, %s26
      %s30 = sphi 0, %s29
      %s46 = sphi 0, %s30
      %s50 = sphi 0, %s50
      %s52 = sphi 0, %s50
      %s53 = sphi 0, %s52
      %s67 = sphi 0, %s53
      %s71 = sphi 0, %s71
      %s73 = sphi 0, %s71
      %s74 = sphi 0, %s73
      %s88 = sphi 0, %s74
      %s92 = sphi 0, %s92
      %s94 = sphi 0, %s92
      %s95 = sphi 0, %s94
      %s109 = sphi 0, %s95
      %s113 = sphi 0, %s113
      %s115 = sphi 0, %s113
      %s116 = sphi 0, %s115
      %s130 = sphi 0, %s116
      %s136 = sphi 0, %s138
      %s139 = sphi 0, %s136
      %s140 = sphi 0, %s139
      %s156 = sphi 0, %s140
    $region4: #{tpu_custom_call.1} parent=1 // loop_header_branch
      %19 = sbr.rel (%p17) target = $region8
    $region5: #{tpu_custom_call.1} parent=1 // loop_body
      %s21 = ssub.s32 %s16, 1
      %s22 = ssub.s32 %s16, 2
      %s23 = sadd.s32 %s16, 1
      %s24 = ssub.s32 %s16, %s23
      %p25 = scmp.eq.s32.totalorder %s24, 0
      %s27 = sadd.s32 %s26, 1
      %s28 = scalar_select %p25, %s26, %s27
      %p31 = pneg %p25
      %p32 = scmp.eq.s32.totalorder %s16, 1
      %p33 = por %p31, %p32
      %p34 = scmp.ne.s32.totalorder %s26, %s29
      %p35 = scmp.eq.s32.totalorder %s16, 0
      %p36 = por %p34, %p35
      %p37 = scmp.ne.s32.totalorder %s26, %s29
      %p38 = scmp.eq.s32.totalorder %s21, 1
      %p39 = por %p37, %p38
      %p40 = scmp.ne.s32.totalorder %s29, %s30
      %p41 = scmp.eq.s32.totalorder %s21, 0
      %p42 = por %p40, %p41
      %p43 = scmp.ne.s32.totalorder %s29, %s30
      %p44 = scmp.eq.s32.totalorder %s22, 1
      %p45 = por %p43, %p44
      %p47 = scmp.ne.s32.totalorder %s30, %s46
      %p48 = scmp.eq.s32.totalorder %s22, 0
      %p49 = por %p47, %p48
      %s51 = sadd.s32 %s50, 1
      %p54 = scmp.eq.s32.totalorder %s16, 1
      %p55 = scmp.ne.s32.totalorder %s50, %s52
      %p56 = scmp.eq.s32.totalorder %s16, 0
      %p57 = por %p55, %p56
      %p58 = scmp.ne.s32.totalorder %s50, %s52
      %p59 = scmp.eq.s32.totalorder %s21, 1
      %p60 = por %p58, %p59
      %p61 = scmp.ne.s32.totalorder %s52, %s53
      %p62 = scmp.eq.s32.totalorder %s21, 0
      %p63 = por %p61, %p62
      %p64 = scmp.ne.s32.totalorder %s52, %s53
      %p65 = scmp.eq.s32.totalorder %s22, 1
      %p66 = por %p64, %p65
      %p68 = scmp.ne.s32.totalorder %s53, %s67
      %p69 = scmp.eq.s32.totalorder %s22, 0
      %p70 = por %p68, %p69
      %s72 = sadd.s32 %s71, 1
      %p75 = scmp.eq.s32.totalorder %s16, 1
      %p76 = scmp.ne.s32.totalorder %s71, %s73
      %p77 = scmp.eq.s32.totalorder %s16, 0
      %p78 = por %p76, %p77
      %p79 = scmp.ne.s32.totalorder %s71, %s73
      %p80 = scmp.eq.s32.totalorder %s21, 1
      %p81 = por %p79, %p80
      %p82 = scmp.ne.s32.totalorder %s73, %s74
      %p83 = scmp.eq.s32.totalorder %s21, 0
      %p84 = por %p82, %p83
      %p85 = scmp.ne.s32.totalorder %s73, %s74
      %p86 = scmp.eq.s32.totalorder %s22, 1
      %p87 = por %p85, %p86
      %p89 = scmp.ne.s32.totalorder %s74, %s88
      %p90 = scmp.eq.s32.totalorder %s22, 0
      %p91 = por %p89, %p90
      %s93 = sadd.s32 %s92, 1
      %p96 = scmp.eq.s32.totalorder %s16, 1
      %p97 = scmp.ne.s32.totalorder %s92, %s94
      %p98 = scmp.eq.s32.totalorder %s16, 0
      %p99 = por %p97, %p98
      %p100 = scmp.ne.s32.totalorder %s92, %s94
      %p101 = scmp.eq.s32.totalorder %s21, 1
      %p102 = por %p100, %p101
      %p103 = scmp.ne.s32.totalorder %s94, %s95
      %p104 = scmp.eq.s32.totalorder %s21, 0
      %p105 = por %p103, %p104
      %p106 = scmp.ne.s32.totalorder %s94, %s95
      %p107 = scmp.eq.s32.totalorder %s22, 1
      %p108 = por %p106, %p107
      %p110 = scmp.ne.s32.totalorder %s95, %s109
      %p111 = scmp.eq.s32.totalorder %s22, 0
      %p112 = por %p110, %p111
      %s114 = sadd.s32 %s113, 1
      %p117 = scmp.eq.s32.totalorder %s16, 1
      %p118 = scmp.ne.s32.totalorder %s113, %s115
      %p119 = scmp.eq.s32.totalorder %s16, 0
      %p120 = por %p118, %p119
      %p121 = scmp.ne.s32.totalorder %s113, %s115
      %p122 = scmp.eq.s32.totalorder %s21, 1
      %p123 = por %p121, %p122
      %p124 = scmp.ne.s32.totalorder %s115, %s116
      %p125 = scmp.eq.s32.totalorder %s21, 0
      %p126 = por %p124, %p125
      %p127 = scmp.ne.s32.totalorder %s115, %s116
      %p128 = scmp.eq.s32.totalorder %s22, 1
      %p129 = por %p127, %p128
      %p131 = scmp.ne.s32.totalorder %s116, %s130
      %p132 = scmp.eq.s32.totalorder %s22, 0
      %p133 = por %p131, %p132
      %s134 = ssub.s32 %s16, %s23
      %p135 = scmp.eq.s32.totalorder %s134, 0
      %s137 = sadd.s32 %s136, 1
      %s138 = scalar_select %p135, %s136, %s137
      %p141 = pneg %p135
      %p142 = scmp.eq.s32.totalorder %s16, 1
      %p143 = por %p141, %p142
      %p144 = scmp.ne.s32.totalorder %s136, %s139
      %p145 = scmp.eq.s32.totalorder %s16, 0
      %p146 = por %p144, %p145
      %p147 = scmp.ne.s32.totalorder %s136, %s139
      %p148 = scmp.eq.s32.totalorder %s21, 1
      %p149 = por %p147, %p148
      %p150 = scmp.ne.s32.totalorder %s139, %s140
      %p151 = scmp.eq.s32.totalorder %s21, 0
      %p152 = por %p150, %p151
      %p153 = scmp.ne.s32.totalorder %s139, %s140
      %p154 = scmp.eq.s32.totalorder %s22, 1
      %p155 = por %p153, %p154
      %p157 = scmp.ne.s32.totalorder %s140, %s156
      %p158 = scmp.eq.s32.totalorder %s22, 0
      %p159 = por %p157, %p158
      %p160 = scmp.le.s32.totalorder 1, %s16
      %p161 = scmp.lt.s32.totalorder %s16, 3
      %p162 = pnand %p160, %p161
      %p163 = pneg %p162
      // Predicated region
      $region9: #{tpu_custom_call.1} parent=5 // pred_check
        _
      $region10: #{tpu_custom_call.1} parent=5 // pred_check_branch
        %165 = sbr.rel (%p162) target = $region12
      $region11: #{tpu_custom_call.1} parent=5 // pred_region
        %s166 = ssub.s32 %s16, 1
        // Predicated region
        $region13: #{tpu_custom_call.1} parent=11 // pred_check
          %p167 = pneg %p63
        $region14: #{tpu_custom_call.1} parent=11 // pred_check_branch
          %169 = sbr.rel (%p167) target = $region16
        $region15: #{tpu_custom_call.1} parent=11 // pred_region
          %s171 = ssub.s32 10240, 10240
          %172 = vsyncadd [#allocation4], %s171
          %s173 = sshll.u32 [#allocation3], 4
          %s174 = int_to_ptr.vmem [resolvable:$true] %s173
          %179 = dma.hbm_to_vmem [thread:$0]  %s1, 10240, %s174, [#allocation4], 128, 128, 8
        $region16: #{tpu_custom_call.1} parent=11 // pred_fallthru
          _
        // Predicated region
        $region17: #{tpu_custom_call.1} parent=11 // pred_check
          %p180 = pneg %p84
        $region18: #{tpu_custom_call.1} parent=11 // pred_check_branch
          %182 = sbr.rel (%p180) target = $region20
        $region19: #{tpu_custom_call.1} parent=11 // pred_region
          _
        $region20: #{tpu_custom_call.1} parent=11 // pred_fallthru
          _
        // Predicated region
        $region21: #{tpu_custom_call.1} parent=11 // pred_check
          %p183 = pneg %p105
        $region22: #{tpu_custom_call.1} parent=11 // pred_check_branch
          %185 = sbr.rel (%p183) target = $region24
        $region23: #{tpu_custom_call.1} parent=11 // pred_region
          %s187 = ssub.s32 4096, 4096
          %188 = vsyncadd [#allocation7], %s187
          %s189 = sshll.u32 [#allocation6], 4
          %s190 = int_to_ptr.vmem [resolvable:$true] %s189
          %195 = dma.hbm_to_vmem [thread:$0]  %s3, 4096, %s190, [#allocation7], 256, 256, 16
        $region24: #{tpu_custom_call.1} parent=11 // pred_fallthru
          _
        // Predicated region
        $region25: #{tpu_custom_call.1} parent=11 // pred_check
          %p196 = pneg %p126
        $region26: #{tpu_custom_call.1} parent=11 // pred_check_branch
          %198 = sbr.rel (%p196) target = $region28
        $region27: #{tpu_custom_call.1} parent=11 // pred_region
          _
        $region28: #{tpu_custom_call.1} parent=11 // pred_fallthru
          _
      $region12: #{tpu_custom_call.1} parent=5 // pred_fallthru
        _
      %p199 = scmp.lt.s32.totalorder %s16, 2
      // Predicated region
      $region29: #{tpu_custom_call.1} parent=5 // pred_check
        %p200 = pneg %p199
      $region30: #{tpu_custom_call.1} parent=5 // pred_check_branch
        %202 = sbr.rel (%p200) target = $region32
      $region31: #{tpu_custom_call.1} parent=5 // pred_region
        // Predicated region
        $region33: #{tpu_custom_call.1} parent=31 // pred_check
          %p203 = pneg %p36
        $region34: #{tpu_custom_call.1} parent=31 // pred_check_branch
          %205 = sbr.rel (%p203) target = $region36
        $region35: #{tpu_custom_call.1} parent=31 // pred_region
          %s206 = sand.u32 %s26, 1
          %s207 = sand.u32 %s26, 1
          %s208 = smul.addr %s207, 64
          %s209 = scalar_lea.vmem [#allocation2], %s208
          %s210 = smul.addr %s16, 8
          %s211 = scalar_lea.vmem %s0, %s210
          // Predicated region
          $region37: #{tpu_custom_call.1} parent=35 // pred_check
            _
          $region38: #{tpu_custom_call.1} parent=35 // pred_check_branch
            %213 = sbr.rel (0) target = $region40
          $region39: #{tpu_custom_call.1} parent=35 // pred_region
            // Predicated region
            $region41: #{tpu_custom_call.1} parent=39 // pred_check
              _
            $region42: #{tpu_custom_call.1} parent=39 // pred_check_branch
              %215 = sbr.rel (0) target = $region44
            $region43: #{tpu_custom_call.1} parent=39 // pred_region
              // Predicated region
              $region56: #{tpu_custom_call.1} parent=43 // pred_check
                _
              $region57: #{tpu_custom_call.1} parent=43 // pred_check_branch
                %245 = sbr.rel (0) target = $region59
              $region58: #{tpu_custom_call.1} parent=43 // pred_region
                loop: start=0, step=1, limit=1
                $region60: #{tpu_custom_call.1} parent=58 // loop_pre_header
                  _
                $region61: #{tpu_custom_call.1} parent=58 // loop_header
                  %s247 = sphi 0, %s251
                  %p248 = scmp.ge.s32.totalorder %s247, 1
                  %s252 = sphi %s211, %s211
                  %s253 = sphi %s209, %s209
                $region62: #{tpu_custom_call.1} parent=58 // loop_header_branch
                  %250 = sbr.rel (%p248) target = $region66
                $region63: #{tpu_custom_call.1} parent=58 // loop_body
                  %v254 = vld [vmem:[%s252] sm:$0xff]
                  %255 = vst [vmem:[%s253] sm:$0xff] %v254
                  %v256 = vld [vmem:[%s252 + $0x10] sm:$0xff]
                  %257 = vst [vmem:[%s253 + $0x8] sm:$0xff] %v256
                  %v258 = vld [vmem:[%s252 + $0x20] sm:$0xff]
                  %259 = vst [vmem:[%s253 + $0x10] sm:$0xff] %v258
                  %v260 = vld [vmem:[%s252 + $0x30] sm:$0xff]
                  %261 = vst [vmem:[%s253 + $0x18] sm:$0xff] %v260
                  %v262 = vld [vmem:[%s252 + $0x40] sm:$0xff]
                  %263 = vst [vmem:[%s253 + $0x20] sm:$0xff] %v262
                  %v264 = vld [vmem:[%s252 + $0x50] sm:$0xff]
                  %265 = vst [vmem:[%s253 + $0x28] sm:$0xff] %v264
                  %v266 = vld [vmem:[%s252 + $0x60] sm:$0xff]
                  %267 = vst [vmem:[%s253 + $0x30] sm:$0xff] %v266
                  %v268 = vld [vmem:[%s252 + $0x70] sm:$0xff]
                  %269 = vst [vmem:[%s253 + $0x38] sm:$0xff] %v268
                $region64: #{tpu_custom_call.1} parent=58 // loop_footer
                  %s251 = sadd.s32 1, %s247
                $region65: #{tpu_custom_call.1} parent=58 // loop_footer_branch
                  %246 = sbr.rel target = $region61
                $region66: #{tpu_custom_call.1} parent=58 // loop_exit
                  _
              $region59: #{tpu_custom_call.1} parent=43 // pred_fallthru
                _
              // Predicated region
              $region67: #{tpu_custom_call.1} parent=43 // pred_check
                _
              $region68: #{tpu_custom_call.1} parent=43 // pred_check_branch
                %271 = sbr.rel target = $region70
              $region69: #{tpu_custom_call.1} parent=43 // pred_region
                _
              $region70: #{tpu_custom_call.1} parent=43 // pred_fallthru
                _
            $region44: #{tpu_custom_call.1} parent=39 // pred_fallthru
              _
            // Predicated region
            $region45: #{tpu_custom_call.1} parent=39 // pred_check
              _
            $region46: #{tpu_custom_call.1} parent=39 // pred_check_branch
              %217 = sbr.rel target = $region48
            $region47: #{tpu_custom_call.1} parent=39 // pred_region
              %s219 = ssub.s32 256, 1
              loop: start=0, step=1, limit=1
              $region49: #{tpu_custom_call.1} parent=47 // loop_pre_header
                _
              $region50: #{tpu_custom_call.1} parent=47 // loop_header
                %s221 = sphi 0, %s225
                %p222 = scmp.ge.s32.totalorder %s221, 1
                %s226 = sphi %s211, %s211
                %s227 = sphi %s209, %s209
              $region51: #{tpu_custom_call.1} parent=47 // loop_header_branch
                %224 = sbr.rel (%p222) target = $region55
              $region52: #{tpu_custom_call.1} parent=47 // loop_body
                %v228 = vld [vmem:[%s226] sm:%s219]
                %229 = vst [vmem:[%s227] sm:%s219] %v228
                %v230 = vld [vmem:[%s226 + $0x10] sm:%s219]
                %231 = vst [vmem:[%s227 + $0x8] sm:%s219] %v230
                %v232 = vld [vmem:[%s226 + $0x20] sm:%s219]
                %233 = vst [vmem:[%s227 + $0x10] sm:%s219] %v232
                %v234 = vld [vmem:[%s226 + $0x30] sm:%s219]
                %235 = vst [vmem:[%s227 + $0x18] sm:%s219] %v234
                %v236 = vld [vmem:[%s226 + $0x40] sm:%s219]
                %237 = vst [vmem:[%s227 + $0x20] sm:%s219] %v236
                %v238 = vld [vmem:[%s226 + $0x50] sm:%s219]
                %239 = vst [vmem:[%s227 + $0x28] sm:%s219] %v238
                %v240 = vld [vmem:[%s226 + $0x60] sm:%s219]
                %241 = vst [vmem:[%s227 + $0x30] sm:%s219] %v240
                %v242 = vld [vmem:[%s226 + $0x70] sm:%s219]
                %243 = vst [vmem:[%s227 + $0x38] sm:%s219] %v242
              $region53: #{tpu_custom_call.1} parent=47 // loop_footer
                %s225 = sadd.s32 1, %s221
              $region54: #{tpu_custom_call.1} parent=47 // loop_footer_branch
                %220 = sbr.rel target = $region50
              $region55: #{tpu_custom_call.1} parent=47 // loop_exit
                _
            $region48: #{tpu_custom_call.1} parent=39 // pred_fallthru
              _
          $region40: #{tpu_custom_call.1} parent=35 // pred_fallthru
            _
          %272 = vnop
        $region36: #{tpu_custom_call.1} parent=31 // pred_fallthru
          _
      $region32: #{tpu_custom_call.1} parent=5 // pred_fallthru
        _
      %p273 = scmp.le.s32.totalorder 1, %s16
      %p274 = scmp.lt.s32.totalorder %s16, 3
      %p275 = pnand %p273, %p274
      %p276 = pneg %p275
      // Predicated region
      $region71: #{tpu_custom_call.1} parent=5 // pred_check
        _
      $region72: #{tpu_custom_call.1} parent=5 // pred_check_branch
        %278 = sbr.rel (%p275) target = $region74
      $region73: #{tpu_custom_call.1} parent=5 // pred_region
        %s279 = ssub.s32 %s16, 1
        %s280 = sand.u32 %s29, 1
        %s281 = sand.u32 %s29, 1
        %s282 = smul.addr %s281, 64
        %s283 = scalar_lea.vmem [#allocation2], %s282
        // Predicated region
        $region75: #{tpu_custom_call.1} parent=73 // pred_check
          %p284 = pneg %p42
        $region76: #{tpu_custom_call.1} parent=73 // pred_check_branch
          %286 = sbr.rel (%p284) target = $region78
        $region77: #{tpu_custom_call.1} parent=73 // pred_region
          _
        $region78: #{tpu_custom_call.1} parent=73 // pred_fallthru
          _
        // Predicated region
        $region79: #{tpu_custom_call.1} parent=73 // pred_check
          %p287 = pneg %p63
        $region80: #{tpu_custom_call.1} parent=73 // pred_check_branch
          %289 = sbr.rel (%p287) target = $region82
        $region81: #{tpu_custom_call.1} parent=73 // pred_region
          %290 = dma.done [#allocation4], 10240
        $region82: #{tpu_custom_call.1} parent=73 // pred_fallthru
          _
        // Predicated region
        $region83: #{tpu_custom_call.1} parent=73 // pred_check
          %p291 = pneg %p105
        $region84: #{tpu_custom_call.1} parent=73 // pred_check_branch
          %293 = sbr.rel (%p291) target = $region86
        $region85: #{tpu_custom_call.1} parent=73 // pred_region
          %294 = dma.done [#allocation7], 4096
        $region86: #{tpu_custom_call.1} parent=73 // pred_fallthru
          _
        %s295 = sand.u32 %s29, 1
        %s296 = sand.u32 %s29, 1
        %s297 = smul.addr %s296, 64
        %s298 = scalar_lea.vmem [#allocation2], %s297
        %p299 = pneg %p42
        %p300 = pneg %p39
        %p301 = pneg %p63
        %p302 = pneg %p60
        %p303 = pneg %p84
        %p304 = pneg %p81
        %p305 = pneg %p105
        %p306 = pneg %p102
        %p307 = pneg %p126
        %p308 = pneg %p123
        %p309 = pneg %p152
        %p310 = pneg %p149
        %s311 = sand.u32 %s139, 1
        %s312 = scalar_lea.sflag [#allocation5], %s311
        %s313 = sand.u32 %s139, 1
        %s314 = smul.addr %s313, 8
        %s315 = scalar_lea.vmem [#allocation8], %s314
        %v316 = vld [vmem:[%s283] sm:$0xff]
        %v317 = vld [vmem:[%s283 + $0x8] sm:$0xff]
        %v318 = vld [vmem:[%s283 + $0x10] sm:$0xff]
        %v319 = vld [vmem:[%s283 + $0x18] sm:$0xff]
        %v320 = vld [vmem:[%s283 + $0x20] sm:$0xff]
        %v321 = vld [vmem:[%s283 + $0x28] sm:$0xff]
        %v322 = vld [vmem:[%s283 + $0x30] sm:$0xff]
        %v323 = vld [vmem:[%s283 + $0x38] sm:$0xff]
        %v324 = vlaneseq
        %v325 = vand.u32 %v324, 127
        %326 = vset.pattern.permute.xlu0 0
        %327 = vperm.xlu0 %326, %v316
        %v328 = vpop.permute.xlu0 %327
        %329 = vset.pattern.permute.xlu0 0
        %330 = vperm.xlu0 %329, %v317
        %v331 = vpop.permute.xlu0 %330
        %332 = vset.pattern.permute.xlu0 0
        %333 = vperm.xlu0 %332, %v318
        %v334 = vpop.permute.xlu0 %333
        %335 = vset.pattern.permute.xlu0 0
        %336 = vperm.xlu0 %335, %v319
        %v337 = vpop.permute.xlu0 %336
        %338 = vset.pattern.permute.xlu0 0
        %339 = vperm.xlu0 %338, %v320
        %v340 = vpop.permute.xlu0 %339
        %341 = vset.pattern.permute.xlu0 0
        %342 = vperm.xlu0 %341, %v321
        %v343 = vpop.permute.xlu0 %342
        %344 = vset.pattern.permute.xlu0 0
        %345 = vperm.xlu0 %344, %v322
        %v346 = vpop.permute.xlu0 %345
        %347 = vset.pattern.permute.xlu0 0
        %348 = vperm.xlu0 %347, %v323
        %v349 = vpop.permute.xlu0 %348
        %vm350 = vcmp.eq.s32.totalorder %v328, %v325
        %vm351 = vcmp.eq.s32.totalorder %v331, %v325
        %vm352 = vcmp.eq.s32.totalorder %v334, %v325
        %vm353 = vcmp.eq.s32.totalorder %v337, %v325
        %vm354 = vcmp.eq.s32.totalorder %v340, %v325
        %vm355 = vcmp.eq.s32.totalorder %v343, %v325
        %vm356 = vcmp.eq.s32.totalorder %v346, %v325
        %vm357 = vcmp.eq.s32.totalorder %v349, %v325
        %v358 = vsel %vm350, 1, 0
        %v359 = vsel %vm351, 1, 0
        %v360 = vsel %vm352, 1, 0
        %v361 = vsel %vm353, 1, 0
        %v362 = vsel %vm354, 1, 0
        %v363 = vsel %vm355, 1, 0
        %v364 = vsel %vm356, 1, 0
        %v365 = vsel %vm357, 1, 0
        %v366 = vcvt.s32.f32 %v358
        %v367 = vcvt.s32.f32 %v359
        %v368 = vcvt.s32.f32 %v360
        %v369 = vcvt.s32.f32 %v361
        %v370 = vcvt.s32.f32 %v362
        %v371 = vcvt.s32.f32 %v363
        %v372 = vcvt.s32.f32 %v364
        %v373 = vcvt.s32.f32 %v365
        %374 = vset.pattern.permute.xlu0 1
        %375 = vperm.xlu0 %374, %v316
        %v376 = vpop.permute.xlu0 %375
        %377 = vset.pattern.permute.xlu0 1
        %378 = vperm.xlu0 %377, %v317
        %v379 = vpop.permute.xlu0 %378
        %380 = vset.pattern.permute.xlu0 1
        %381 = vperm.xlu0 %380, %v318
        %v382 = vpop.permute.xlu0 %381
        %383 = vset.pattern.permute.xlu0 1
        %384 = vperm.xlu0 %383, %v319
        %v385 = vpop.permute.xlu0 %384
        %386 = vset.pattern.permute.xlu0 1
        %387 = vperm.xlu0 %386, %v320
        %v388 = vpop.permute.xlu0 %387
        %389 = vset.pattern.permute.xlu0 1
        %390 = vperm.xlu0 %389, %v321
        %v391 = vpop.permute.xlu0 %390
        %392 = vset.pattern.permute.xlu0 1
        %393 = vperm.xlu0 %392, %v322
        %v394 = vpop.permute.xlu0 %393
        %395 = vset.pattern.permute.xlu0 1
        %396 = vperm.xlu0 %395, %v323
        %v397 = vpop.permute.xlu0 %396
        %vm398 = vcmp.eq.s32.totalorder %v376, %v325
        %vm399 = vcmp.eq.s32.totalorder %v379, %v325
        %vm400 = vcmp.eq.s32.totalorder %v382, %v325
        %vm401 = vcmp.eq.s32.totalorder %v385, %v325
        %vm402 = vcmp.eq.s32.totalorder %v388, %v325
        %vm403 = vcmp.eq.s32.totalorder %v391, %v325
        %vm404 = vcmp.eq.s32.totalorder %v394, %v325
        %vm405 = vcmp.eq.s32.totalorder %v397, %v325
        %v406 = vsel %vm398, 1, 0
        %v407 = vsel %vm399, 1, 0
        %v408 = vsel %vm400, 1, 0
        %v409 = vsel %vm401, 1, 0
        %v410 = vsel %vm402, 1, 0
        %v411 = vsel %vm403, 1, 0
        %v412 = vsel %vm404, 1, 0
        %v413 = vsel %vm405, 1, 0
        %v414 = vcvt.s32.f32 %v406
        %v415 = vcvt.s32.f32 %v407
        %v416 = vcvt.s32.f32 %v408
        %v417 = vcvt.s32.f32 %v409
        %v418 = vcvt.s32.f32 %v410
        %v419 = vcvt.s32.f32 %v411
        %v420 = vcvt.s32.f32 %v412
        %v421 = vcvt.s32.f32 %v413
        %422 = vset.pattern.permute.xlu0 2
        %423 = vperm.xlu0 %422, %v316
        %v424 = vpop.permute.xlu0 %423
        %425 = vset.pattern.permute.xlu0 2
        %426 = vperm.xlu0 %425, %v317
        %v427 = vpop.permute.xlu0 %426
        %428 = vset.pattern.permute.xlu0 2
        %429 = vperm.xlu0 %428, %v318
        %v430 = vpop.permute.xlu0 %429
        %431 = vset.pattern.permute.xlu0 2
        %432 = vperm.xlu0 %431, %v319
        %v433 = vpop.permute.xlu0 %432
        %434 = vset.pattern.permute.xlu0 2
        %435 = vperm.xlu0 %434, %v320
        %v436 = vpop.permute.xlu0 %435
        %437 = vset.pattern.permute.xlu0 2
        %438 = vperm.xlu0 %437, %v321
        %v439 = vpop.permute.xlu0 %438
        %440 = vset.pattern.permute.xlu0 2
        %441 = vperm.xlu0 %440, %v322
        %v442 = vpop.permute.xlu0 %441
        %443 = vset.pattern.permute.xlu0 2
        %444 = vperm.xlu0 %443, %v323
        %v445 = vpop.permute.xlu0 %444
        %vm446 = vcmp.eq.s32.totalorder %v424, %v325
        %vm447 = vcmp.eq.s32.totalorder %v427, %v325
        %vm448 = vcmp.eq.s32.totalorder %v430, %v325
        %vm449 = vcmp.eq.s32.totalorder %v433, %v325
        %vm450 = vcmp.eq.s32.totalorder %v436, %v325
        %vm451 = vcmp.eq.s32.totalorder %v439, %v325
        %vm452 = vcmp.eq.s32.totalorder %v442, %v325
        %vm453 = vcmp.eq.s32.totalorder %v445, %v325
        %v454 = vsel %vm446, 1, 0
        %v455 = vsel %vm447, 1, 0
        %v456 = vsel %vm448, 1, 0
        %v457 = vsel %vm449, 1, 0
        %v458 = vsel %vm450, 1, 0
        %v459 = vsel %vm451, 1, 0
        %v460 = vsel %vm452, 1, 0
        %v461 = vsel %vm453, 1, 0
        %v462 = vcvt.s32.f32 %v454
        %v463 = vcvt.s32.f32 %v455
        %v464 = vcvt.s32.f32 %v456
        %v465 = vcvt.s32.f32 %v457
        %v466 = vcvt.s32.f32 %v458
        %v467 = vcvt.s32.f32 %v459
        %v468 = vcvt.s32.f32 %v460
        %v469 = vcvt.s32.f32 %v461
        %470 = vset.pattern.permute.xlu0 3
        %471 = vperm.xlu0 %470, %v316
        %v472 = vpop.permute.xlu0 %471
        %473 = vset.pattern.permute.xlu0 3
        %474 = vperm.xlu0 %473, %v317
        %v475 = vpop.permute.xlu0 %474
        %476 = vset.pattern.permute.xlu0 3
        %477 = vperm.xlu0 %476, %v318
        %v478 = vpop.permute.xlu0 %477
        %479 = vset.pattern.permute.xlu0 3
        %480 = vperm.xlu0 %479, %v319
        %v481 = vpop.permute.xlu0 %480
        %482 = vset.pattern.permute.xlu0 3
        %483 = vperm.xlu0 %482, %v320
        %v484 = vpop.permute.xlu0 %483
        %485 = vset.pattern.permute.xlu0 3
        %486 = vperm.xlu0 %485, %v321
        %v487 = vpop.permute.xlu0 %486
        %488 = vset.pattern.permute.xlu0 3
        %489 = vperm.xlu0 %488, %v322
        %v490 = vpop.permute.xlu0 %489
        %491 = vset.pattern.permute.xlu0 3
        %492 = vperm.xlu0 %491, %v323
        %v493 = vpop.permute.xlu0 %492
        %vm494 = vcmp.eq.s32.totalorder %v472, %v325
        %vm495 = vcmp.eq.s32.totalorder %v475, %v325
        %vm496 = vcmp.eq.s32.totalorder %v478, %v325
        %vm497 = vcmp.eq.s32.totalorder %v481, %v325
        %vm498 = vcmp.eq.s32.totalorder %v484, %v325
        %vm499 = vcmp.eq.s32.totalorder %v487, %v325
        %vm500 = vcmp.eq.s32.totalorder %v490, %v325
        %vm501 = vcmp.eq.s32.totalorder %v493, %v325
        %v502 = vsel %vm494, 1, 0
        %v503 = vsel %vm495, 1, 0
        %v504 = vsel %vm496, 1, 0
        %v505 = vsel %vm497, 1, 0
        %v506 = vsel %vm498, 1, 0
        %v507 = vsel %vm499, 1, 0
        %v508 = vsel %vm500, 1, 0
        %v509 = vsel %vm501, 1, 0
        %v510 = vcvt.s32.f32 %v502
        %v511 = vcvt.s32.f32 %v503
        %v512 = vcvt.s32.f32 %v504
        %v513 = vcvt.s32.f32 %v505
        %v514 = vcvt.s32.f32 %v506
        %v515 = vcvt.s32.f32 %v507
        %v516 = vcvt.s32.f32 %v508
        %v517 = vcvt.s32.f32 %v509
        %518 = vset.pattern.permute.xlu0 4
        %519 = vperm.xlu0 %518, %v316
        %v520 = vpop.permute.xlu0 %519
        %521 = vset.pattern.permute.xlu0 4
        %522 = vperm.xlu0 %521, %v317
        %v523 = vpop.permute.xlu0 %522
        %524 = vset.pattern.permute.xlu0 4
        %525 = vperm.xlu0 %524, %v318
        %v526 = vpop.permute.xlu0 %525
        %527 = vset.pattern.permute.xlu0 4
        %528 = vperm.xlu0 %527, %v319
        %v529 = vpop.permute.xlu0 %528
        %530 = vset.pattern.permute.xlu0 4
        %531 = vperm.xlu0 %530, %v320
        %v532 = vpop.permute.xlu0 %531
        %533 = vset.pattern.permute.xlu0 4
        %534 = vperm.xlu0 %533, %v321
        %v535 = vpop.permute.xlu0 %534
        %536 = vset.pattern.permute.xlu0 4
        %537 = vperm.xlu0 %536, %v322
        %v538 = vpop.permute.xlu0 %537
        %539 = vset.pattern.permute.xlu0 4
        %540 = vperm.xlu0 %539, %v323
        %v541 = vpop.permute.xlu0 %540
        %vm542 = vcmp.eq.s32.totalorder %v520, %v325
        %vm543 = vcmp.eq.s32.totalorder %v523, %v325
        %vm544 = vcmp.eq.s32.totalorder %v526, %v325
        %vm545 = vcmp.eq.s32.totalorder %v529, %v325
        %vm546 = vcmp.eq.s32.totalorder %v532, %v325
        %vm547 = vcmp.eq.s32.totalorder %v535, %v325
        %vm548 = vcmp.eq.s32.totalorder %v538, %v325
        %vm549 = vcmp.eq.s32.totalorder %v541, %v325
        %v550 = vsel %vm542, 1, 0
        %v551 = vsel %vm543, 1, 0
        %v552 = vsel %vm544, 1, 0
        %v553 = vsel %vm545, 1, 0
        %v554 = vsel %vm546, 1, 0
        %v555 = vsel %vm547, 1, 0
        %v556 = vsel %vm548, 1, 0
        %v557 = vsel %vm549, 1, 0
        %v558 = vcvt.s32.f32 %v550
        %v559 = vcvt.s32.f32 %v551
        %v560 = vcvt.s32.f32 %v552
        %v561 = vcvt.s32.f32 %v553
        %v562 = vcvt.s32.f32 %v554
        %v563 = vcvt.s32.f32 %v555
        %v564 = vcvt.s32.f32 %v556
        %v565 = vcvt.s32.f32 %v557
        %v566 = vld [vmem:[#allocation3] sm:$0xff]
        %v567 = vld [vmem:[#allocation3 + $0x8] sm:$0xff]
        %v568 = vld [vmem:[#allocation3 + $0x10] sm:$0xff]
        %v569 = vld [vmem:[#allocation3 + $0x18] sm:$0xff]
        %v570 = vld [vmem:[#allocation3 + $0x20] sm:$0xff]
        %v571 = vld [vmem:[#allocation3 + $0x28] sm:$0xff]
        %v572 = vld [vmem:[#allocation3 + $0x30] sm:$0xff]
        %v573 = vld [vmem:[#allocation3 + $0x38] sm:$0xff]
        %v574 = vld [vmem:[#allocation3 + $0x40] sm:$0xff]
        %v575 = vld [vmem:[#allocation3 + $0x48] sm:$0xff]
        %v576 = vld [vmem:[#allocation3 + $0x50] sm:$0xff]
        %v577 = vld [vmem:[#allocation3 + $0x58] sm:$0xff]
        %v578 = vld [vmem:[#allocation3 + $0x60] sm:$0xff]
        %v579 = vld [vmem:[#allocation3 + $0x68] sm:$0xff]
        %v580 = vld [vmem:[#allocation3 + $0x70] sm:$0xff]
        %v581 = vld [vmem:[#allocation3 + $0x78] sm:$0xff]
        %v582 = vld [vmem:[#allocation3 + $0x80] sm:$0xff]
        %v583 = vld [vmem:[#allocation3 + $0x88] sm:$0xff]
        %v584 = vld [vmem:[#allocation3 + $0x90] sm:$0xff]
        %v585 = vld [vmem:[#allocation3 + $0x98] sm:$0xff]
        %v586 = vld [vmem:[#allocation3 + $0xa0] sm:$0xff]
        %v587 = vld [vmem:[#allocation3 + $0xa8] sm:$0xff]
        %v588 = vld [vmem:[#allocation3 + $0xb0] sm:$0xff]
        %v589 = vld [vmem:[#allocation3 + $0xb8] sm:$0xff]
        %v590 = vld [vmem:[#allocation3 + $0xc0] sm:$0xff]
        %v591 = vld [vmem:[#allocation3 + $0xc8] sm:$0xff]
        %v592 = vld [vmem:[#allocation3 + $0xd0] sm:$0xff]
        %v593 = vld [vmem:[#allocation3 + $0xd8] sm:$0xff]
        %v594 = vld [vmem:[#allocation3 + $0xe0] sm:$0xff]
        %v595 = vld [vmem:[#allocation3 + $0xe8] sm:$0xff]
        %v596 = vld [vmem:[#allocation3 + $0xf0] sm:$0xff]
        %v597 = vld [vmem:[#allocation3 + $0xf8] sm:$0xff]
        %v598 = vld [vmem:[#allocation3 + $0x100] sm:$0xff]
        %v599 = vld [vmem:[#allocation3 + $0x108] sm:$0xff]
        %v600 = vld [vmem:[#allocation3 + $0x110] sm:$0xff]
        %v601 = vld [vmem:[#allocation3 + $0x118] sm:$0xff]
        %v602 = vld [vmem:[#allocation3 + $0x120] sm:$0xff]
        %v603 = vld [vmem:[#allocation3 + $0x128] sm:$0xff]
        %v604 = vld [vmem:[#allocation3 + $0x130] sm:$0xff]
        %v605 = vld [vmem:[#allocation3 + $0x138] sm:$0xff]
        %v606 = vld [vmem:[#allocation3 + $0x140] sm:$0xff]
        %v607 = vld [vmem:[#allocation3 + $0x148] sm:$0xff]
        %v608 = vld [vmem:[#allocation3 + $0x150] sm:$0xff]
        %v609 = vld [vmem:[#allocation3 + $0x158] sm:$0xff]
        %v610 = vld [vmem:[#allocation3 + $0x160] sm:$0xff]
        %v611 = vld [vmem:[#allocation3 + $0x168] sm:$0xff]
        %v612 = vld [vmem:[#allocation3 + $0x170] sm:$0xff]
        %v613 = vld [vmem:[#allocation3 + $0x178] sm:$0xff]
        %v614 = vld [vmem:[#allocation3 + $0x180] sm:$0xff]
        %v615 = vld [vmem:[#allocation3 + $0x188] sm:$0xff]
        %v616 = vld [vmem:[#allocation3 + $0x190] sm:$0xff]
        %v617 = vld [vmem:[#allocation3 + $0x198] sm:$0xff]
        %v618 = vld [vmem:[#allocation3 + $0x1a0] sm:$0xff]
        %v619 = vld [vmem:[#allocation3 + $0x1a8] sm:$0xff]
        %v620 = vld [vmem:[#allocation3 + $0x1b0] sm:$0xff]
        %v621 = vld [vmem:[#allocation3 + $0x1b8] sm:$0xff]
        %v622 = vld [vmem:[#allocation3 + $0x1c0] sm:$0xff]
        %v623 = vld [vmem:[#allocation3 + $0x1c8] sm:$0xff]
        %v624 = vld [vmem:[#allocation3 + $0x1d0] sm:$0xff]
        %v625 = vld [vmem:[#allocation3 + $0x1d8] sm:$0xff]
        %v626 = vld [vmem:[#allocation3 + $0x1e0] sm:$0xff]
        %v627 = vld [vmem:[#allocation3 + $0x1e8] sm:$0xff]
        %v628 = vld [vmem:[#allocation3 + $0x1f0] sm:$0xff]
        %v629 = vld [vmem:[#allocation3 + $0x1f8] sm:$0xff]
        %v630 = vld [vmem:[#allocation3 + $0x200] sm:$0xff]
        %v631 = vld [vmem:[#allocation3 + $0x208] sm:$0xff]
        %v632 = vld [vmem:[#allocation3 + $0x210] sm:$0xff]
        %v633 = vld [vmem:[#allocation3 + $0x218] sm:$0xff]
        %v634 = vld [vmem:[#allocation3 + $0x220] sm:$0xff]
        %v635 = vld [vmem:[#allocation3 + $0x228] sm:$0xff]
        %v636 = vld [vmem:[#allocation3 + $0x230] sm:$0xff]
        %v637 = vld [vmem:[#allocation3 + $0x238] sm:$0xff]
        %v638 = vld [vmem:[#allocation3 + $0x240] sm:$0xff]
        %v639 = vld [vmem:[#allocation3 + $0x248] sm:$0xff]
        %v640 = vld [vmem:[#allocation3 + $0x250] sm:$0xff]
        %v641 = vld [vmem:[#allocation3 + $0x258] sm:$0xff]
        %v642 = vld [vmem:[#allocation3 + $0x260] sm:$0xff]
        %v643 = vld [vmem:[#allocation3 + $0x268] sm:$0xff]
        %v644 = vld [vmem:[#allocation3 + $0x270] sm:$0xff]
        %v645 = vld [vmem:[#allocation3 + $0x278] sm:$0xff]
        %646 = vmatprep.subr.mxu0 0.0
        %647 = vmatpush1.msra.mxu0 %v581
        %648 = vmatprep.subr.mxu0 0.0
        %649 = vmatpush1.msra.mxu0 %v580
        %650 = vmatprep.subr.mxu0 0.0
        %651 = vmatpush1.msra.mxu0 %v579
        %652 = vmatprep.subr.mxu0 0.0
        %653 = vmatpush1.msra.mxu0 %v578
        %654 = vmatprep.subr.mxu0 0.0
        %655 = vmatpush1.msra.mxu0 %v577
        %656 = vmatprep.subr.mxu0 0.0
        %657 = vmatpush1.msra.mxu0 %v576
        %658 = vmatprep.subr.mxu0 0.0
        %659 = vmatpush1.msra.mxu0 %v575
        %660 = vmatprep.subr.mxu0 0.0
        %661 = vmatpush1.msra.mxu0 %v574
        %662 = vmatprep.subr.mxu0 0.0
        %663 = vmatpush1.msra.mxu0 %v573
        %664 = vmatprep.subr.mxu0 0.0
        %665 = vmatpush1.msra.mxu0 %v572
        %666 = vmatprep.subr.mxu0 0.0
        %667 = vmatpush1.msra.mxu0 %v571
        %668 = vmatprep.subr.mxu0 0.0
        %669 = vmatpush1.msra.mxu0 %v570
        %670 = vmatprep.subr.mxu0 0.0
        %671 = vmatpush1.msra.mxu0 %v569
        %672 = vmatprep.subr.mxu0 0.0
        %673 = vmatpush1.msra.mxu0 %v568
        %674 = vmatprep.subr.mxu0 0.0
        %675 = vmatpush1.msra.mxu0 %v567
        %676 = vmatprep.subr.mxu0 0.0
        %677 = vmatpush1.msra.mxu0 %v566
        %678 = vmatprep.subr.mxu0 0.0
        %679 = vmatpush2.msra.mxu0 %v597
        %680 = vmatprep.subr.mxu0 0.0
        %681 = vmatpush2.msra.mxu0 %v596
        %682 = vmatprep.subr.mxu0 0.0
        %683 = vmatpush2.msra.mxu0 %v595
        %684 = vmatprep.subr.mxu0 0.0
        %685 = vmatpush2.msra.mxu0 %v594
        %686 = vmatprep.subr.mxu0 0.0
        %687 = vmatpush2.msra.mxu0 %v593
        %688 = vmatprep.subr.mxu0 0.0
        %689 = vmatpush2.msra.mxu0 %v592
        %690 = vmatprep.subr.mxu0 0.0
        %691 = vmatpush2.msra.mxu0 %v591
        %692 = vmatprep.subr.mxu0 0.0
        %693 = vmatpush2.msra.mxu0 %v590
        %694 = vmatprep.subr.mxu0 0.0
        %695 = vmatpush2.msra.mxu0 %v589
        %696 = vmatprep.subr.mxu0 0.0
        %697 = vmatpush2.msra.mxu0 %v588
        %698 = vmatprep.subr.mxu0 0.0
        %699 = vmatpush2.msra.mxu0 %v587
        %700 = vmatprep.subr.mxu0 0.0
        %701 = vmatpush2.msra.mxu0 %v586
        %702 = vmatprep.subr.mxu0 0.0
        %703 = vmatpush2.msra.mxu0 %v585
        %704 = vmatprep.subr.mxu0 0.0
        %705 = vmatpush2.msra.mxu0 %v584
        %706 = vmatprep.subr.mxu0 0.0
        %707 = vmatpush2.msra.mxu0 %v583
        %708 = vmatprep.subr.mxu0 0.0
        %709 = vmatpush2.msra.mxu0 %v582
        %710 = vmatprep.mubr.f32.mxu0 %v414
        %711 = vmatmul.mubr.f32.gmra.mxu0 %v366
        %v712 = vpop.f32.mrf.mxu0
        %v713 = vadd.f32 0.0, %v712
        %v714 = vpop.f32.mrf.mxu0
        %715 = vmatprep.mubr.f32.mxu0 %v415
        %716 = vmatmul.mubr.f32.gmra.mxu0 %v367
        %v717 = vpop.f32.mrf.mxu0
        %v718 = vadd.f32 0.0, %v717
        %v719 = vpop.f32.mrf.mxu0
        %720 = vmatprep.mubr.f32.mxu0 %v416
        %721 = vmatmul.mubr.f32.gmra.mxu0 %v368
        %v722 = vpop.f32.mrf.mxu0
        %v723 = vadd.f32 0.0, %v722
        %v724 = vpop.f32.mrf.mxu0
        %725 = vmatprep.mubr.f32.mxu0 %v417
        %726 = vmatmul.mubr.f32.gmra.mxu0 %v369
        %v727 = vpop.f32.mrf.mxu0
        %v728 = vadd.f32 0.0, %v727
        %v729 = vpop.f32.mrf.mxu0
        %730 = vmatprep.mubr.f32.mxu0 %v418
        %731 = vmatmul.mubr.f32.gmra.mxu0 %v370
        %v732 = vpop.f32.mrf.mxu0
        %v733 = vadd.f32 0.0, %v732
        %v734 = vpop.f32.mrf.mxu0
        %735 = vmatprep.mubr.f32.mxu0 %v419
        %736 = vmatmul.mubr.f32.gmra.mxu0 %v371
        %v737 = vpop.f32.mrf.mxu0
        %v738 = vadd.f32 0.0, %v737
        %v739 = vpop.f32.mrf.mxu0
        %740 = vmatprep.mubr.f32.mxu0 %v420
        %741 = vmatmul.mubr.f32.gmra.mxu0 %v372
        %v742 = vpop.f32.mrf.mxu0
        %v743 = vadd.f32 0.0, %v742
        %v744 = vpop.f32.mrf.mxu0
        %745 = vmatprep.mubr.f32.mxu0 %v421
        %746 = vmatmul.mubr.f32.gmra.mxu0 %v373
        %v747 = vpop.f32.mrf.mxu0
        %v748 = vadd.f32 0.0, %v747
        %v749 = vpop.f32.mrf.mxu0
        %750 = vdwg.mxu0
        %751 = vmatprep.subr.mxu0 0.0
        %752 = vmatpush1.msra.mxu0 %v613
        %753 = vmatprep.subr.mxu0 0.0
        %754 = vmatpush1.msra.mxu0 %v612
        %755 = vmatprep.subr.mxu0 0.0
        %756 = vmatpush1.msra.mxu0 %v611
        %757 = vmatprep.subr.mxu0 0.0
        %758 = vmatpush1.msra.mxu0 %v610
        %759 = vmatprep.subr.mxu0 0.0
        %760 = vmatpush1.msra.mxu0 %v609
        %761 = vmatprep.subr.mxu0 0.0
        %762 = vmatpush1.msra.mxu0 %v608
        %763 = vmatprep.subr.mxu0 0.0
        %764 = vmatpush1.msra.mxu0 %v607
        %765 = vmatprep.subr.mxu0 0.0
        %766 = vmatpush1.msra.mxu0 %v606
        %767 = vmatprep.subr.mxu0 0.0
        %768 = vmatpush1.msra.mxu0 %v605
        %769 = vmatprep.subr.mxu0 0.0
        %770 = vmatpush1.msra.mxu0 %v604
        %771 = vmatprep.subr.mxu0 0.0
        %772 = vmatpush1.msra.mxu0 %v603
        %773 = vmatprep.subr.mxu0 0.0
        %774 = vmatpush1.msra.mxu0 %v602
        %775 = vmatprep.subr.mxu0 0.0
        %776 = vmatpush1.msra.mxu0 %v601
        %777 = vmatprep.subr.mxu0 0.0
        %778 = vmatpush1.msra.mxu0 %v600
        %779 = vmatprep.subr.mxu0 0.0
        %780 = vmatpush1.msra.mxu0 %v599
        %781 = vmatprep.subr.mxu0 0.0
        %782 = vmatpush1.msra.mxu0 %v598
        %783 = vmatprep.subr.mxu0 0.0
        %784 = vmatpush2.msra.mxu0 %v629
        %785 = vmatprep.subr.mxu0 0.0
        %786 = vmatpush2.msra.mxu0 %v628
        %787 = vmatprep.subr.mxu0 0.0
        %788 = vmatpush2.msra.mxu0 %v627
        %789 = vmatprep.subr.mxu0 0.0
        %790 = vmatpush2.msra.mxu0 %v626
        %791 = vmatprep.subr.mxu0 0.0
        %792 = vmatpush2.msra.mxu0 %v625
        %793 = vmatprep.subr.mxu0 0.0
        %794 = vmatpush2.msra.mxu0 %v624
        %795 = vmatprep.subr.mxu0 0.0
        %796 = vmatpush2.msra.mxu0 %v623
        %797 = vmatprep.subr.mxu0 0.0
        %798 = vmatpush2.msra.mxu0 %v622
        %799 = vmatprep.subr.mxu0 0.0
        %800 = vmatpush2.msra.mxu0 %v621
        %801 = vmatprep.subr.mxu0 0.0
        %802 = vmatpush2.msra.mxu0 %v620
        %803 = vmatprep.subr.mxu0 0.0
        %804 = vmatpush2.msra.mxu0 %v619
        %805 = vmatprep.subr.mxu0 0.0
        %806 = vmatpush2.msra.mxu0 %v618
        %807 = vmatprep.subr.mxu0 0.0
        %808 = vmatpush2.msra.mxu0 %v617
        %809 = vmatprep.subr.mxu0 0.0
        %810 = vmatpush2.msra.mxu0 %v616
        %811 = vmatprep.subr.mxu0 0.0
        %812 = vmatpush2.msra.mxu0 %v615
        %813 = vmatprep.subr.mxu0 0.0
        %814 = vmatpush2.msra.mxu0 %v614
        %815 = vmatprep.mubr.f32.mxu0 %v510
        %816 = vmatmul.mubr.f32.gmra.mxu0 %v462
        %v817 = vpop.f32.mrf.mxu0
        %v818 = vadd.f32 %v713, %v817
        %v819 = vpop.f32.mrf.mxu0
        %820 = vmatprep.mubr.f32.mxu0 %v511
        %821 = vmatmul.mubr.f32.gmra.mxu0 %v463
        %v822 = vpop.f32.mrf.mxu0
        %v823 = vadd.f32 %v718, %v822
        %v824 = vpop.f32.mrf.mxu0
        %825 = vmatprep.mubr.f32.mxu0 %v512
        %826 = vmatmul.mubr.f32.gmra.mxu0 %v464
        %v827 = vpop.f32.mrf.mxu0
        %v828 = vadd.f32 %v723, %v827
        %v829 = vpop.f32.mrf.mxu0
        %830 = vmatprep.mubr.f32.mxu0 %v513
        %831 = vmatmul.mubr.f32.gmra.mxu0 %v465
        %v832 = vpop.f32.mrf.mxu0
        %v833 = vadd.f32 %v728, %v832
        %v834 = vpop.f32.mrf.mxu0
        %835 = vmatprep.mubr.f32.mxu0 %v514
        %836 = vmatmul.mubr.f32.gmra.mxu0 %v466
        %v837 = vpop.f32.mrf.mxu0
        %v838 = vadd.f32 %v733, %v837
        %v839 = vpop.f32.mrf.mxu0
        %840 = vmatprep.mubr.f32.mxu0 %v515
        %841 = vmatmul.mubr.f32.gmra.mxu0 %v467
        %v842 = vpop.f32.mrf.mxu0
        %v843 = vadd.f32 %v738, %v842
        %v844 = vpop.f32.mrf.mxu0
        %845 = vmatprep.mubr.f32.mxu0 %v516
        %846 = vmatmul.mubr.f32.gmra.mxu0 %v468
        %v847 = vpop.f32.mrf.mxu0
        %v848 = vadd.f32 %v743, %v847
        %v849 = vpop.f32.mrf.mxu0
        %850 = vmatprep.mubr.f32.mxu0 %v517
        %851 = vmatmul.mubr.f32.gmra.mxu0 %v469
        %v852 = vpop.f32.mrf.mxu0
        %v853 = vadd.f32 %v748, %v852
        %v854 = vpop.f32.mrf.mxu0
        %855 = vdwg.mxu0
        %856 = vmatprep.subr.mxu0 0.0
        %857 = vmatpush1.msra.mxu0 %v645
        %858 = vmatprep.subr.mxu0 0.0
        %859 = vmatpush1.msra.mxu0 %v644
        %860 = vmatprep.subr.mxu0 0.0
        %861 = vmatpush1.msra.mxu0 %v643
        %862 = vmatprep.subr.mxu0 0.0
        %863 = vmatpush1.msra.mxu0 %v642
        %864 = vmatprep.subr.mxu0 0.0
        %865 = vmatpush1.msra.mxu0 %v641
        %866 = vmatprep.subr.mxu0 0.0
        %867 = vmatpush1.msra.mxu0 %v640
        %868 = vmatprep.subr.mxu0 0.0
        %869 = vmatpush1.msra.mxu0 %v639
        %870 = vmatprep.subr.mxu0 0.0
        %871 = vmatpush1.msra.mxu0 %v638
        %872 = vmatprep.subr.mxu0 0.0
        %873 = vmatpush1.msra.mxu0 %v637
        %874 = vmatprep.subr.mxu0 0.0
        %875 = vmatpush1.msra.mxu0 %v636
        %876 = vmatprep.subr.mxu0 0.0
        %877 = vmatpush1.msra.mxu0 %v635
        %878 = vmatprep.subr.mxu0 0.0
        %879 = vmatpush1.msra.mxu0 %v634
        %880 = vmatprep.subr.mxu0 0.0
        %881 = vmatpush1.msra.mxu0 %v633
        %882 = vmatprep.subr.mxu0 0.0
        %883 = vmatpush1.msra.mxu0 %v632
        %884 = vmatprep.subr.mxu0 0.0
        %885 = vmatpush1.msra.mxu0 %v631
        %886 = vmatprep.subr.mxu0 0.0
        %887 = vmatpush1.msra.mxu0 %v630
        %888 = vmatprep.subr.mxu0 0.0
        %889 = vmatpush2.msra.mxu0 0.0
        %890 = vmatprep.subr.mxu0 0.0
        %891 = vmatpush2.msra.mxu0 0.0
        %892 = vmatprep.subr.mxu0 0.0
        %893 = vmatpush2.msra.mxu0 0.0
        %894 = vmatprep.subr.mxu0 0.0
        %895 = vmatpush2.msra.mxu0 0.0
        %896 = vmatprep.subr.mxu0 0.0
        %897 = vmatpush2.msra.mxu0 0.0
        %898 = vmatprep.subr.mxu0 0.0
        %899 = vmatpush2.msra.mxu0 0.0
        %900 = vmatprep.subr.mxu0 0.0
        %901 = vmatpush2.msra.mxu0 0.0
        %902 = vmatprep.subr.mxu0 0.0
        %903 = vmatpush2.msra.mxu0 0.0
        %904 = vmatprep.subr.mxu0 0.0
        %905 = vmatpush2.msra.mxu0 0.0
        %906 = vmatprep.subr.mxu0 0.0
        %907 = vmatpush2.msra.mxu0 0.0
        %908 = vmatprep.subr.mxu0 0.0
        %909 = vmatpush2.msra.mxu0 0.0
        %910 = vmatprep.subr.mxu0 0.0
        %911 = vmatpush2.msra.mxu0 0.0
        %912 = vmatprep.subr.mxu0 0.0
        %913 = vmatpush2.msra.mxu0 0.0
        %914 = vmatprep.subr.mxu0 0.0
        %915 = vmatpush2.msra.mxu0 0.0
        %916 = vmatprep.subr.mxu0 0.0
        %917 = vmatpush2.msra.mxu0 0.0
        %918 = vmatprep.subr.mxu0 0.0
        %919 = vmatpush2.msra.mxu0 0.0
        %920 = vmatprep.mubr.f32.mxu0 0.0
        %921 = vmatmul.mubr.f32.gmra.mxu0 %v558
        %v922 = vpop.f32.mrf.mxu0
        %v923 = vadd.f32 %v818, %v922
        %v924 = vpop.f32.mrf.mxu0
        %925 = vmatprep.mubr.f32.mxu0 0.0
        %926 = vmatmul.mubr.f32.gmra.mxu0 %v559
        %v927 = vpop.f32.mrf.mxu0
        %v928 = vadd.f32 %v823, %v927
        %v929 = vpop.f32.mrf.mxu0
        %930 = vmatprep.mubr.f32.mxu0 0.0
        %931 = vmatmul.mubr.f32.gmra.mxu0 %v560
        %v932 = vpop.f32.mrf.mxu0
        %v933 = vadd.f32 %v828, %v932
        %v934 = vpop.f32.mrf.mxu0
        %935 = vmatprep.mubr.f32.mxu0 0.0
        %936 = vmatmul.mubr.f32.gmra.mxu0 %v561
        %v937 = vpop.f32.mrf.mxu0
        %v938 = vadd.f32 %v833, %v937
        %v939 = vpop.f32.mrf.mxu0
        %940 = vmatprep.mubr.f32.mxu0 0.0
        %941 = vmatmul.mubr.f32.gmra.mxu0 %v562
        %v942 = vpop.f32.mrf.mxu0
        %v943 = vadd.f32 %v838, %v942
        %v944 = vpop.f32.mrf.mxu0
        %945 = vmatprep.mubr.f32.mxu0 0.0
        %946 = vmatmul.mubr.f32.gmra.mxu0 %v563
        %v947 = vpop.f32.mrf.mxu0
        %v948 = vadd.f32 %v843, %v947
        %v949 = vpop.f32.mrf.mxu0
        %950 = vmatprep.mubr.f32.mxu0 0.0
        %951 = vmatmul.mubr.f32.gmra.mxu0 %v564
        %v952 = vpop.f32.mrf.mxu0
        %v953 = vadd.f32 %v848, %v952
        %v954 = vpop.f32.mrf.mxu0
        %955 = vmatprep.mubr.f32.mxu0 0.0
        %956 = vmatmul.mubr.f32.gmra.mxu0 %v565
        %v957 = vpop.f32.mrf.mxu0
        %v958 = vadd.f32 %v853, %v957
        %v959 = vpop.f32.mrf.mxu0
        %960 = vdwg.mxu0
        %v961 = vmax.f32 %v923, %v943
        %v962 = vmax.f32 %v928, %v948
        %v963 = vmax.f32 %v933, %v953
        %v964 = vmax.f32 %v938, %v958
        %v965 = vmax.f32 %v961, %v962
        %v966 = vmax.f32 %v963, %v964
        %v967 = vmax.f32 %v965, %v966
        %v968 = vld [vmem:[%s2] sm:$0x1]
        %v970 = vlaneseq
        %v971 = vshrl.u32 %v970, 7
        %v972 = vsub.s32 0, %v971
        %v973 = vrot.slane %v968, %v972
        %v975 = vadd.f32 %v967, %v973
        %v976 = vmax.f32 %v975, 0.0
        %v977 = vld [vmem:[#allocation6] sm:$0xff]
        %v978 = vld [vmem:[#allocation6 + $0x8] sm:$0xff]
        %v979 = vld [vmem:[#allocation6 + $0x10] sm:$0xff]
        %v980 = vld [vmem:[#allocation6 + $0x18] sm:$0xff]
        %v981 = vld [vmem:[#allocation6 + $0x20] sm:$0xff]
        %v982 = vld [vmem:[#allocation6 + $0x28] sm:$0xff]
        %v983 = vld [vmem:[#allocation6 + $0x30] sm:$0xff]
        %v984 = vld [vmem:[#allocation6 + $0x38] sm:$0xff]
        %v985 = vld [vmem:[#allocation6 + $0x40] sm:$0xff]
        %v986 = vld [vmem:[#allocation6 + $0x48] sm:$0xff]
        %v987 = vld [vmem:[#allocation6 + $0x50] sm:$0xff]
        %v988 = vld [vmem:[#allocation6 + $0x58] sm:$0xff]
        %v989 = vld [vmem:[#allocation6 + $0x60] sm:$0xff]
        %v990 = vld [vmem:[#allocation6 + $0x68] sm:$0xff]
        %v991 = vld [vmem:[#allocation6 + $0x70] sm:$0xff]
        %v992 = vld [vmem:[#allocation6 + $0x78] sm:$0xff]
        %v993 = vld [vmem:[#allocation6 + $0x80] sm:$0xff]
        %v994 = vld [vmem:[#allocation6 + $0x88] sm:$0xff]
        %v995 = vld [vmem:[#allocation6 + $0x90] sm:$0xff]
        %v996 = vld [vmem:[#allocation6 + $0x98] sm:$0xff]
        %v997 = vld [vmem:[#allocation6 + $0xa0] sm:$0xff]
        %v998 = vld [vmem:[#allocation6 + $0xa8] sm:$0xff]
        %v999 = vld [vmem:[#allocation6 + $0xb0] sm:$0xff]
        %v1000 = vld [vmem:[#allocation6 + $0xb8] sm:$0xff]
        %v1001 = vld [vmem:[#allocation6 + $0xc0] sm:$0xff]
        %v1002 = vld [vmem:[#allocation6 + $0xc8] sm:$0xff]
        %v1003 = vld [vmem:[#allocation6 + $0xd0] sm:$0xff]
        %v1004 = vld [vmem:[#allocation6 + $0xd8] sm:$0xff]
        %v1005 = vld [vmem:[#allocation6 + $0xe0] sm:$0xff]
        %v1006 = vld [vmem:[#allocation6 + $0xe8] sm:$0xff]
        %v1007 = vld [vmem:[#allocation6 + $0xf0] sm:$0xff]
        %v1008 = vld [vmem:[#allocation6 + $0xf8] sm:$0xff]
        %v1009 = vld [vmem:[%s4] sm:$0x3]
        %v1011 = vlaneseq
        %v1012 = vshrl.u32 %v1011, 7
        %v1013 = vsub.s32 0, %v1012
        %v1014 = vrot.slane %v1009, %v1013
        %v1015 = vlaneseq
        %v1016 = vshrl.u32 %v1015, 7
        %v1017 = vsub.s32 1, %v1016
        %v1018 = vrot.slane %v1009, %v1017
        %1021 = vmatprep.subr.mxu0 %v1008
        %1022 = vmatpush1.msra.mxu0 %v1007
        %1023 = vmatprep.subr.mxu0 %v1006
        %1024 = vmatpush1.msra.mxu0 %v1005
        %1025 = vmatprep.subr.mxu0 %v1004
        %1026 = vmatpush1.msra.mxu0 %v1003
        %1027 = vmatprep.subr.mxu0 %v1002
        %1028 = vmatpush1.msra.mxu0 %v1001
        %1029 = vmatprep.subr.mxu0 %v1000
        %1030 = vmatpush1.msra.mxu0 %v999
        %1031 = vmatprep.subr.mxu0 %v998
        %1032 = vmatpush1.msra.mxu0 %v997
        %1033 = vmatprep.subr.mxu0 %v996
        %1034 = vmatpush1.msra.mxu0 %v995
        %1035 = vmatprep.subr.mxu0 %v994
        %1036 = vmatpush1.msra.mxu0 %v993
        %1037 = vmatprep.subr.mxu0 %v992
        %1038 = vmatpush1.msra.mxu0 %v991
        %1039 = vmatprep.subr.mxu0 %v990
        %1040 = vmatpush1.msra.mxu0 %v989
        %1041 = vmatprep.subr.mxu0 %v988
        %1042 = vmatpush1.msra.mxu0 %v987
        %1043 = vmatprep.subr.mxu0 %v986
        %1044 = vmatpush1.msra.mxu0 %v985
        %1045 = vmatprep.subr.mxu0 %v984
        %1046 = vmatpush1.msra.mxu0 %v983
        %1047 = vmatprep.subr.mxu0 %v982
        %1048 = vmatpush1.msra.mxu0 %v981
        %1049 = vmatprep.subr.mxu0 %v980
        %1050 = vmatpush1.msra.mxu0 %v979
        %1051 = vmatprep.subr.mxu0 %v978
        %1052 = vmatpush1.msra.mxu0 %v977
        %1053 = vmatprep.subr.mxu0 0.0
        %1054 = vmatpush2.msra.mxu0 0.0
        %1055 = vmatprep.subr.mxu0 0.0
        %1056 = vmatpush2.msra.mxu0 0.0
        %1057 = vmatprep.subr.mxu0 0.0
        %1058 = vmatpush2.msra.mxu0 0.0
        %1059 = vmatprep.subr.mxu0 0.0
        %1060 = vmatpush2.msra.mxu0 0.0
        %1061 = vmatprep.subr.mxu0 0.0
        %1062 = vmatpush2.msra.mxu0 0.0
        %1063 = vmatprep.subr.mxu0 0.0
        %1064 = vmatpush2.msra.mxu0 0.0
        %1065 = vmatprep.subr.mxu0 0.0
        %1066 = vmatpush2.msra.mxu0 0.0
        %1067 = vmatprep.subr.mxu0 0.0
        %1068 = vmatpush2.msra.mxu0 0.0
        %1069 = vmatprep.subr.mxu0 0.0
        %1070 = vmatpush2.msra.mxu0 0.0
        %1071 = vmatprep.subr.mxu0 0.0
        %1072 = vmatpush2.msra.mxu0 0.0
        %1073 = vmatprep.subr.mxu0 0.0
        %1074 = vmatpush2.msra.mxu0 0.0
        %1075 = vmatprep.subr.mxu0 0.0
        %1076 = vmatpush2.msra.mxu0 0.0
        %1077 = vmatprep.subr.mxu0 0.0
        %1078 = vmatpush2.msra.mxu0 0.0
        %1079 = vmatprep.subr.mxu0 0.0
        %1080 = vmatpush2.msra.mxu0 0.0
        %1081 = vmatprep.subr.mxu0 0.0
        %1082 = vmatpush2.msra.mxu0 0.0
        %1083 = vmatprep.subr.mxu0 0.0
        %1084 = vmatpush2.msra.mxu0 0.0
        %1085 = vmatprep.mubr.f32.mxu0 0.0
        %1086 = vmatmul.mubr.f32.gmra.mxu0 %v976
        %v1087 = vpop.f32.mrf.mxu0
        %v1088 = vadd.f32 %v1014, %v1087
        %v1089 = vpop.f32.mrf.mxu0
        %v1090 = vadd.f32 %v1018, %v1089
        %1091 = vdwg.mxu0
        %v1092 = vmax.f32 %v1088, 0.0
        %v1093 = vxor.u32 %v1090, 2147483648
        %v1094 = vmul.f32 %v1093, 1.442695
        %v1095 = vpow.pop %v1094
        %v1096 = vadd.f32 %v1095, 1.0
        %v1097 = vrcp.pop %v1096
        %v1098 = vmul.f32 1.0, %v1097
        %v1099 = vsub.f32 %v1092, %v976
        %v1100 = vmul.f32 %v1098, %v1099
        %v1101 = vadd.f32 %v976, %v1100
        %1102 = vst [vmem:[%s315] sm:$0xff] %v1101
        %s1103 = sand.u32 %s139, 1
        %s1104 = scalar_lea.sflag [#allocation5], %s1103
        %s1105 = sand.u32 %s139, 1
        %s1106 = smul.addr %s1105, 8
        %s1107 = scalar_lea.vmem [#allocation8], %s1106
        // Predicated region
        $region87: #{tpu_custom_call.1} parent=73 // pred_check
          %p1108 = pneg %p149
        $region88: #{tpu_custom_call.1} parent=73 // pred_check_branch
          %1110 = sbr.rel (%p1108) target = $region90
        $region89: #{tpu_custom_call.1} parent=73 // pred_region
          %s1112 = ssub.s32 128, 128
          %1113 = vsyncadd %s1104, %s1112
          %s1114 = smul.addr %s21, 128
          %s1115 = scalar_lea.hbm %s5, %s1114
          %s1117 = sshll.u32 %s1107, 4
          %s1118 = int_to_ptr.vmem [resolvable:$true] %s1117
          %1120 = dma.vmem_to_hbm [thread:$0]  %s1118, 128, %s1115, %s1104
        $region90: #{tpu_custom_call.1} parent=73 // pred_fallthru
          _
      $region74: #{tpu_custom_call.1} parent=5 // pred_fallthru
        _
      %p1121 = scmp.le.s32.totalorder 2, %s16
      // Predicated region
      $region91: #{tpu_custom_call.1} parent=5 // pred_check
        %p1122 = pneg %p1121
      $region92: #{tpu_custom_call.1} parent=5 // pred_check_branch
        %1124 = sbr.rel (%p1122) target = $region94
      $region93: #{tpu_custom_call.1} parent=5 // pred_region
        %s1125 = ssub.s32 %s16, 2
        // Predicated region
        $region95: #{tpu_custom_call.1} parent=93 // pred_check
          %p1126 = pneg %p155
        $region96: #{tpu_custom_call.1} parent=93 // pred_check_branch
          %1128 = sbr.rel (%p1126) target = $region98
        $region97: #{tpu_custom_call.1} parent=93 // pred_region
          %s1129 = sand.u32 %s140, 1
          %s1130 = scalar_lea.sflag [#allocation5], %s1129
          %s1131 = sand.u32 %s140, 1
          %s1132 = smul.addr %s1131, 8
          %s1133 = scalar_lea.vmem [#allocation8], %s1132
          %1134 = dma.done %s1130, 128
        $region98: #{tpu_custom_call.1} parent=93 // pred_fallthru
          _
      $region94: #{tpu_custom_call.1} parent=5 // pred_fallthru
        _
    $region6: #{tpu_custom_call.1} parent=1 // loop_footer
      %s20 = sadd.s32 1, %s16
    $region7: #{tpu_custom_call.1} parent=1 // loop_footer_branch
      %15 = sbr.rel target = $region3
    $region8: #{tpu_custom_call.1} parent=1 // loop_exit
      _
    %1135 = vsyncpa [#allocation4], 1
    %s1136 = scalar_lea.sflag [#allocation4], 1
    %1137 = vsyncpa %s1136, 1
    %1138 = vsyncpa [#allocation7], 1
    %1139 = vsyncpa [#allocation5], 1
    %s1140 = scalar_lea.sflag [#allocation5], 1
    %1141 = vsyncpa %s1140, 1

</llo_original>
